<compile_context>
chip_gen: v5e
topology: v5e:2x2
jax: 0.10.0
libtpu: 0.0.40
codegen_flags: <defaults>
</compile_context>

<pallas_src>
import jax
import jax.numpy as jnp
from jax.experimental import pallas as pl
from jax.experimental.pallas import tpu as pltpu

_LANE = 128
_SUB = 8
_BLOCK_BYTES = 2 * 1024 * 1024  # ~2 MiB/block -> 8 MiB buffered (safe on v5e/v7x)


def _temp_scale_kernel(t_ref, x_ref, out_ref):
    # t_ref  : (1,)      temperature, f32                     (SMEM)
    # x_ref  : (bm, bn)  lane-dense slice of `mean`           (VMEM)
    # out_ref: (bm, bn)  mean / temperature                   (VMEM)
    inv = 1.0 / t_ref[0]                       # scalar f32 reciprocal, hoisted
    out_ref[...] = (x_ref[...] * inv).astype(out_ref.dtype)


def _lane_dense_shape(shape):
    """Pick (rows, cols) with cols a multiple of 128 when the size allows it."""
    total = 1
    for d in shape:
        total *= d
    # Natural flatten: (N*C, H*W).
    rows = shape[0] * shape[1] if len(shape) >= 2 else 1
    cols = total // rows
    if cols % _LANE == 0:
        return rows, cols
    # Otherwise re-factor the flat element count into a lane-aligned last dim.
    best = 0
    cap = min(total, 512 * _LANE)
    c = _LANE
    while c <= cap:
        if total % c == 0:
            best = c
        c += _LANE
    if best:
        return total // best, best
    # No lane-aligned factorization: fall back to the natural flatten
    # (block cols == full dim -> correct, but masked partial stores).
    return rows, cols


def _choose_tiles(rows, cols, itemsize):
    """Per-block tile (bm, bn): <= ~2 MiB, lane-dense bn, >=2 grid steps if possible."""
    lane_aligned = (cols % _LANE == 0)
    if lane_aligned:
        bn_cap = max(_LANE, (_BLOCK_BYTES // (_SUB * itemsize)) // _LANE * _LANE)
        bn = min(cols, bn_cap)
    else:
        bn = cols  # must equal the full dim when not 128-aligned

    row_cap = max(_SUB, (_BLOCK_BYTES // max(bn * itemsize, 1)) // _SUB * _SUB)
    bm = rows if rows <= _SUB else min(rows, row_cap)
    if bm < rows:
        bm = max(_SUB, (bm // _SUB) * _SUB)  # multiple of 8 unless full-dim

    # Guarantee >= 2 grid steps when splittable (v7x megacore: 2 TensorCores).
    if pl.cdiv(rows, bm) * pl.cdiv(cols, bn) < 2:
        if rows > _SUB:
            half = -(-rows // 2)
            bm = max(_SUB, -(-half // _SUB) * _SUB)
        elif lane_aligned and bn > _LANE:
            bn = max(_LANE, (bn // 2) // _LANE * _LANE)
    return bm, bn


def temperature_scaling(mean, variance, entropy, mutual_info, temperature):
    """Pallas implementation of TemperatureScaling.forward.

    variance / entropy / mutual_info are part of the module signature but are
    not used by the forward pass (matches the PyTorch reference).
    """
    del variance, entropy, mutual_info  # unused by the module's forward

    rows, cols = _lane_dense_shape(mean.shape)
    x2d = mean.reshape(rows, cols)
    # Keep temperature in f32 (matches the f32 nn.Parameter), never rounded
    # to the activation dtype before the scale.
    t32 = jnp.asarray(temperature, jnp.float32).reshape(1)

    itemsize = jnp.dtype(mean.dtype).itemsize
    bm, bn = _choose_tiles(rows, cols, itemsize)
    grid = (pl.cdiv(rows, bm), pl.cdiv(cols, bn))

    out2d = pl.pallas_call(
        _temp_scale_kernel,
        out_shape=jax.ShapeDtypeStruct((rows, cols), mean.dtype),
        grid=grid,
        in_specs=[
            pl.BlockSpec(memory_space=pltpu.MemorySpace.SMEM),   # temperature
            pl.BlockSpec((bm, bn), lambda i, j: (i, j)),         # mean slab
        ],
        out_specs=pl.BlockSpec((bm, bn), lambda i, j: (i, j)),
        compiler_params=pltpu.CompilerParams(
            dimension_semantics=("parallel", "parallel")),
    )(t32, x2d)
    return out2d.reshape(mean.shape)


if __name__ == "__main__":
    key = jax.random.PRNGKey(0)
    N, C, H, W = 2, 4, 16, 16          # batch, n_classes, spatial
    keys = jax.random.split(key, 5)

    # Deterministic example inputs. The module initializes temperature to 1.0
    # (nn.Parameter(torch.ones(1))); use a non-trivial learned value so the
    # check actually exercises the scale.
    mean = jax.nn.softmax(jax.random.normal(keys[0], (N, C, H, W)), axis=1)
    variance = jnp.abs(jax.random.normal(keys[1], (N, C, H, W))) * 0.1
    entropy = jnp.abs(jax.random.normal(keys[2], (N, H, W)))
    mutual_info = jnp.abs(jax.random.normal(keys[3], (N, H, W))) * 0.5
    temperature = jnp.array([1.7], jnp.float32)

    out = temperature_scaling(mean, variance, entropy, mutual_info, temperature)
    out = jax.block_until_ready(out)

    # Pure-JAX reference of the forward semantics: mean / temperature.
    ref = mean / temperature
    assert jnp.allclose(out, ref, atol=1e-6, rtol=1e-6), \
        float(jnp.max(jnp.abs(out - ref)))

    print("KERNEL_OK")
</pallas_src>

<mosaic_0001>
module attributes {stable_mosaic.version = 11 : i64} {
  func.func @_temp_scale_kernel(%arg0: i32, %arg1: i32, %arg2: memref<1xf32, #tpu.memory_space<smem>>, %arg3: memref<8x128xf32, #tpu.memory_space<vmem>>, %arg4: memref<8x128xf32, #tpu.memory_space<vmem>>) attributes {dimension_semantics = [#tpu.dimension_semantics<parallel>, #tpu.dimension_semantics<parallel>], iteration_bounds = array<i64: 1, 2>, scalar_prefetch = 0 : i64, scratch_operands = 0 : i64, tpu.core_type = #tpu.core_type<tc>, window_params = [{transform_indices = @transform_0, window_bounds = array<i64: 1>}, {transform_indices = @transform_1, window_bounds = array<i64: 8, 128>}, {transform_indices = @transform_2, window_bounds = array<i64: 8, 128>}]} {
    %c0 = arith.constant 0 : index
    %0 = memref.load %arg2[%c0] : memref<1xf32, #tpu.memory_space<smem>>
    %cst = arith.constant 1.000000e+00 : f32
    %1 = arith.divf %cst, %0 : f32
    %c0_0 = arith.constant 0 : index
    %c0_1 = arith.constant 0 : index
    %2 = vector.load %arg3[%c0_0, %c0_1] : memref<8x128xf32, #tpu.memory_space<vmem>>, vector<8x128xf32>
    %3 = vector.broadcast %1 : f32 to vector<8x128xf32>
    %4 = arith.mulf %2, %3 : vector<8x128xf32>
    %c0_2 = arith.constant 0 : index
    %c0_3 = arith.constant 0 : index
    %5 = vector.load %arg4[%c0_2, %c0_3] : memref<8x128xf32, #tpu.memory_space<vmem>>, vector<8x128xf32>
    tpu.vector_store %arg4[%c0_2, %c0_3], %4 {strides = array<i32>} : memref<8x128xf32, #tpu.memory_space<vmem>>, vector<8x128xf32>,
    return
  }
  func.func @transform_0(%arg0: i32, %arg1: i32) -> i32 {
    %c0_i32 = arith.constant 0 : i32
    %c0_i32_0 = arith.constant 0 : i32
    return %c0_i32 : i32
  }
  func.func @transform_1(%arg0: i32, %arg1: i32) -> (i32, i32) {
    %c0_i32 = arith.constant 0 : i32
    return %arg0, %arg1 : i32, i32
  }
  func.func @transform_2(%arg0: i32, %arg1: i32) -> (i32, i32) {
    %c0_i32 = arith.constant 0 : i32
    return %arg0, %arg1 : i32, i32
  }
}

</mosaic_0001>

<llo_original>
// kernel: tpu_custom_call.1
$region0: #{tpu_custom_call.1}
  #allocation0 [shape = 'u32[]', space=smem, size = 0x4, offset = 0x4, fixed_abs, tag = 'smem constant byte address 0x4 - core index']
  #allocation1 [shape = 'u32[72,128]{1,0:T(1,128)}', space=vmem, size = 0x9000, scoped, tag = 'internal scratch']
  #allocation2 [shape = 'f32[1]{0:T(128)S(6)}', space=smem, size = 0x200, scoped, tag = 'scoped memory for tpu_custom_call.1']
  %s0 = inlined_call_operand.<no memory space> [shape: f32[1], index: 0, kind: input, shape index: {}]
  %s1 = inlined_call_operand.hbm [shape: f32[8,256], index: 1, kind: input, shape index: {}]
  %s2 = inlined_call_operand.hbm [shape: f32[8,256], index: 2, kind: output, shape index: {}]
  %s3 = sld [smem:[#allocation0]]
  $region45: #{tpu_custom_call.1} parent=0
    _
  %s5 = ssub.s32 1, %s3
  %s6 = scalar_select 0, %s5, %s3
  %7 = sst [smem:[#allocation2]] %s0
  $region1: #{tpu_custom_call.1} parent=0
    #allocation3 [shape = 'u8[8192]{0}', space=vmem, size = 0x2000, scoped, tag = 'input window, operand 1']
    #allocation4 [shape = 's32[2]{0}', space=sflag, size = 0x8, scoped, tag = 'scoped memory for tpu_custom_call.1']
    #allocation5 [shape = 's32[2]{0}', space=sflag, size = 0x8, scoped, tag = 'scoped memory for tpu_custom_call.1']
    #allocation6 [shape = 'u8[8192]{0}', space=vmem, size = 0x2000, scoped, tag = 'output window, operand 0']
    %8 = vsyncpa [#allocation4], 0
    %s9 = scalar_lea.sflag [#allocation4], 1
    %10 = vsyncpa %s9, 0
    %11 = vsyncpa [#allocation5], 0
    %s12 = scalar_lea.sflag [#allocation5], 1
    %13 = vsyncpa %s12, 0
    loop: start=0, step=1, limit=4
    $region2: #{tpu_custom_call.1} parent=1 // loop_pre_header
      _
    $region3: #{tpu_custom_call.1} parent=1 // loop_header
      %s15 = sphi 0, %s19
      %p16 = scmp.ge.s32.totalorder %s15, 4
      %s22 = sphi 0, %s34
      %s23 = sphi 0, %s30
      %s24 = sphi 0, %s22
      %s25 = sphi 0, %s23
      %s26 = sphi 0, %s24
      %s27 = sphi 0, %s25
      %s35 = sphi 0, %s35
      %s37 = sphi 0, %s35
      %s38 = sphi 0, %s37
      %s52 = sphi 0, %s38
      %s60 = sphi 0, %s62
      %s63 = sphi 0, %s60
      %s64 = sphi 0, %s63
      %s80 = sphi 0, %s64
      %s88 = sphi 0, %s90
      %s91 = sphi 0, %s88
      %s92 = sphi 0, %s91
      %s108 = sphi 0, %s92
    $region4: #{tpu_custom_call.1} parent=1 // loop_header_branch
      %18 = sbr.rel (%p16) target = $region8
    $region5: #{tpu_custom_call.1} parent=1 // loop_body
      %s20 = ssub.s32 %s15, 1
      %s21 = ssub.s32 %s15, 2
      %s28 = sadd.s32 1, %s23
      %p29 = scmp.ge.s32.totalorder %s28, 2
      %s30 = scalar_select %p29, 0, %s28
      %s31 = sadd.s32 1, %s22
      %s32 = scalar_select %p29, %s31, %s22
      %p33 = scmp.ge.s32.totalorder %s32, 1
      %s34 = scalar_select %p33, 0, %s32
      %s36 = sadd.s32 %s35, 1
      %p39 = scmp.eq.s32.totalorder %s15, 1
      %p40 = scmp.ne.s32.totalorder %s35, %s37
      %p41 = scmp.eq.s32.totalorder %s15, 0
      %p42 = por %p40, %p41
      %p43 = scmp.ne.s32.totalorder %s35, %s37
      %p44 = scmp.eq.s32.totalorder %s20, 1
      %p45 = por %p43, %p44
      %p46 = scmp.ne.s32.totalorder %s37, %s38
      %p47 = scmp.eq.s32.totalorder %s20, 0
      %p48 = por %p46, %p47
      %p49 = scmp.ne.s32.totalorder %s37, %s38
      %p50 = scmp.eq.s32.totalorder %s21, 1
      %p51 = por %p49, %p50
      %p53 = scmp.ne.s32.totalorder %s38, %s52
      %p54 = scmp.eq.s32.totalorder %s21, 0
      %p55 = por %p53, %p54
      %s56 = ssub.s32 %s22, %s34
      %s57 = ssub.s32 %s23, %s30
      %s58 = sor.u32 %s56, %s57
      %p59 = scmp.eq.s32.totalorder %s58, 0
      %s61 = sadd.s32 %s60, 1
      %s62 = scalar_select %p59, %s60, %s61
      %p65 = pneg %p59
      %p66 = scmp.eq.s32.totalorder %s15, 1
      %p67 = por %p65, %p66
      %p68 = scmp.ne.s32.totalorder %s60, %s63
      %p69 = scmp.eq.s32.totalorder %s15, 0
      %p70 = por %p68, %p69
      %p71 = scmp.ne.s32.totalorder %s60, %s63
      %p72 = scmp.eq.s32.totalorder %s20, 1
      %p73 = por %p71, %p72
      %p74 = scmp.ne.s32.totalorder %s63, %s64
      %p75 = scmp.eq.s32.totalorder %s20, 0
      %p76 = por %p74, %p75
      %p77 = scmp.ne.s32.totalorder %s63, %s64
      %p78 = scmp.eq.s32.totalorder %s21, 1
      %p79 = por %p77, %p78
      %p81 = scmp.ne.s32.totalorder %s64, %s80
      %p82 = scmp.eq.s32.totalorder %s21, 0
      %p83 = por %p81, %p82
      %s84 = ssub.s32 %s22, %s34
      %s85 = ssub.s32 %s23, %s30
      %s86 = sor.u32 %s84, %s85
      %p87 = scmp.eq.s32.totalorder %s86, 0
      %s89 = sadd.s32 %s88, 1
      %s90 = scalar_select %p87, %s88, %s89
      %p93 = pneg %p87
      %p94 = scmp.eq.s32.totalorder %s15, 1
      %p95 = por %p93, %p94
      %p96 = scmp.ne.s32.totalorder %s88, %s91
      %p97 = scmp.eq.s32.totalorder %s15, 0
      %p98 = por %p96, %p97
      %p99 = scmp.ne.s32.totalorder %s88, %s91
      %p100 = scmp.eq.s32.totalorder %s20, 1
      %p101 = por %p99, %p100
      %p102 = scmp.ne.s32.totalorder %s91, %s92
      %p103 = scmp.eq.s32.totalorder %s20, 0
      %p104 = por %p102, %p103
      %p105 = scmp.ne.s32.totalorder %s91, %s92
      %p106 = scmp.eq.s32.totalorder %s21, 1
      %p107 = por %p105, %p106
      %p109 = scmp.ne.s32.totalorder %s92, %s108
      %p110 = scmp.eq.s32.totalorder %s21, 0
      %p111 = por %p109, %p110
      %p112 = scmp.le.s32.totalorder 1, %s15
      %p113 = scmp.lt.s32.totalorder %s15, 3
      %p114 = pnand %p112, %p113
      %p115 = pneg %p114
      // Predicated region
      $region9: #{tpu_custom_call.1} parent=5 // pred_check
        _
      $region10: #{tpu_custom_call.1} parent=5 // pred_check_branch
        %117 = sbr.rel (%p114) target = $region12
      $region11: #{tpu_custom_call.1} parent=5 // pred_region
        %s118 = ssub.s32 %s15, 1
        // Predicated region
        $region13: #{tpu_custom_call.1} parent=11 // pred_check
          %p119 = pneg %p48
        $region14: #{tpu_custom_call.1} parent=11 // pred_check_branch
          %121 = sbr.rel (%p119) target = $region16
        $region15: #{tpu_custom_call.1} parent=11 // pred_region
          _
        $region16: #{tpu_custom_call.1} parent=11 // pred_fallthru
          _
      $region12: #{tpu_custom_call.1} parent=5 // pred_fallthru
        _
      %p122 = scmp.lt.s32.totalorder %s15, 2
      // Predicated region
      $region17: #{tpu_custom_call.1} parent=5 // pred_check
        %p123 = pneg %p122
      $region18: #{tpu_custom_call.1} parent=5 // pred_check_branch
        %125 = sbr.rel (%p123) target = $region20
      $region19: #{tpu_custom_call.1} parent=5 // pred_region
        // Predicated region
        $region21: #{tpu_custom_call.1} parent=19 // pred_check
          %p126 = pneg %p70
        $region22: #{tpu_custom_call.1} parent=19 // pred_check_branch
          %128 = sbr.rel (%p126) target = $region24
        $region23: #{tpu_custom_call.1} parent=19 // pred_region
          %s129 = sand.u32 %s60, 1
          %s130 = scalar_lea.sflag [#allocation4], %s129
          %s131 = sand.u32 %s60, 1
          %s132 = smul.addr %s131, 8
          %s133 = scalar_lea.vmem [#allocation3], %s132
          %135 = vsyncadd %s130, 0
          %s136 = smul.addr %s22, 2
          %s137 = sadd.s32 %s23, %s136
          %s138 = smul.addr %s137, 8
          %s139 = scalar_lea.hbm %s1, %s138
          %s141 = sshll.u32 %s139, 4
          %s142 = int_to_ptr.hbm [resolvable:$true] %s141
          %s143 = sshll.u32 %s133, 4
          %s144 = int_to_ptr.vmem [resolvable:$true] %s143
          %146 = dma.hbm_to_vmem [thread:$0]  %s142, 128, %s144, %s130
        $region24: #{tpu_custom_call.1} parent=19 // pred_fallthru
          _
      $region20: #{tpu_custom_call.1} parent=5 // pred_fallthru
        _
      %p147 = scmp.le.s32.totalorder 1, %s15
      %p148 = scmp.lt.s32.totalorder %s15, 3
      %p149 = pnand %p147, %p148
      %p150 = pneg %p149
      // Predicated region
      $region25: #{tpu_custom_call.1} parent=5 // pred_check
        _
      $region26: #{tpu_custom_call.1} parent=5 // pred_check_branch
        %152 = sbr.rel (%p149) target = $region28
      $region27: #{tpu_custom_call.1} parent=5 // pred_region
        %s153 = ssub.s32 %s15, 1
        %s154 = sand.u32 %s63, 1
        %s155 = scalar_lea.sflag [#allocation4], %s154
        %s156 = sand.u32 %s63, 1
        %s157 = smul.addr %s156, 8
        %s158 = scalar_lea.vmem [#allocation3], %s157
        // Predicated region
        $region29: #{tpu_custom_call.1} parent=27 // pred_check
          %p159 = pneg %p76
        $region30: #{tpu_custom_call.1} parent=27 // pred_check_branch
          %161 = sbr.rel (%p159) target = $region32
        $region31: #{tpu_custom_call.1} parent=27 // pred_region
          %163 = dma.done %s155, 128
        $region32: #{tpu_custom_call.1} parent=27 // pred_fallthru
          _
        %p164 = pneg %p48
        %p165 = pneg %p45
        %s166 = sand.u32 %s63, 1
        %s167 = scalar_lea.sflag [#allocation4], %s166
        %s168 = sand.u32 %s63, 1
        %s169 = smul.addr %s168, 8
        %s170 = scalar_lea.vmem [#allocation3], %s169
        %p171 = pneg %p76
        %p172 = pneg %p73
        %p173 = pneg %p104
        %p174 = pneg %p101
        %s175 = sand.u32 %s91, 1
        %s176 = scalar_lea.sflag [#allocation5], %s175
        %s177 = sand.u32 %s91, 1
        %s178 = smul.addr %s177, 8
        %s179 = scalar_lea.vmem [#allocation6], %s178
        %s180 = sld [smem:[#allocation2]]
        %v181 = vstv %s180
        %v182 = vrcp.pop %v181
        %v183 = vmul.f32 %v181, %v182
        %v184 = vsub.f32 1.0, %v183
        %v185 = vmul.f32 %v182, %v184
        %v186 = vadd.f32 %v182, %v185
        %vm187 = vweird.f32 %v181
        %vm188 = vweird.f32 %v182
        %vm189 = vmor %vm187, %vm188
        %v190 = vsel %vm189, %v182, %v186
        %v191 = vand.u32 2147483647, %v181
        %vm192 = vcmp.eq.f32.partialorder %v191, 8.507059e+37
        %v193 = vand.u32 %v181, 2147483648
        %v194 = vor.u32 1.1754944e-38, %v193
        %v195 = vsel %vm192, %v194, %v190
        %s196 = vtos %v195
        %v197 = vld [vmem:[%s158] sm:$0xff]
        %v198 = vstv %s196
        %v199 = vmul.f32 %v197, %v198
        %200 = vst [vmem:[%s179] sm:$0xff] %v199
        %s201 = sand.u32 %s91, 1
        %s202 = scalar_lea.sflag [#allocation5], %s201
        %s203 = sand.u32 %s91, 1
        %s204 = smul.addr %s203, 8
        %s205 = scalar_lea.vmem [#allocation6], %s204
        // Predicated region
        $region33: #{tpu_custom_call.1} parent=27 // pred_check
          %p206 = pneg %p101
        $region34: #{tpu_custom_call.1} parent=27 // pred_check_branch
          %208 = sbr.rel (%p206) target = $region36
        $region35: #{tpu_custom_call.1} parent=27 // pred_region
          %210 = vsyncadd %s202, 0
          %s211 = smul.addr %s24, 2
          %s212 = sadd.s32 %s25, %s211
          %s213 = smul.addr %s212, 8
          %s214 = scalar_lea.hbm %s2, %s213
          %s216 = sshll.u32 %s205, 4
          %s217 = int_to_ptr.vmem [resolvable:$true] %s216
          %s218 = sshll.u32 %s214, 4
          %s219 = int_to_ptr.hbm [resolvable:$true] %s218
          %221 = dma.vmem_to_hbm [thread:$0]  %s217, 128, %s219, %s202
        $region36: #{tpu_custom_call.1} parent=27 // pred_fallthru
          _
      $region28: #{tpu_custom_call.1} parent=5 // pred_fallthru
        _
      %p222 = scmp.le.s32.totalorder 2, %s15
      // Predicated region
      $region37: #{tpu_custom_call.1} parent=5 // pred_check
        %p223 = pneg %p222
      $region38: #{tpu_custom_call.1} parent=5 // pred_check_branch
        %225 = sbr.rel (%p223) target = $region40
      $region39: #{tpu_custom_call.1} parent=5 // pred_region
        %s226 = ssub.s32 %s15, 2
        // Predicated region
        $region41: #{tpu_custom_call.1} parent=39 // pred_check
          %p227 = pneg %p107
        $region42: #{tpu_custom_call.1} parent=39 // pred_check_branch
          %229 = sbr.rel (%p227) target = $region44
        $region43: #{tpu_custom_call.1} parent=39 // pred_region
          %s230 = sand.u32 %s92, 1
          %s231 = scalar_lea.sflag [#allocation5], %s230
          %s232 = sand.u32 %s92, 1
          %s233 = smul.addr %s232, 8
          %s234 = scalar_lea.vmem [#allocation6], %s233
          %236 = dma.done %s231, 128
        $region44: #{tpu_custom_call.1} parent=39 // pred_fallthru
          _
      $region40: #{tpu_custom_call.1} parent=5 // pred_fallthru
        _
    $region6: #{tpu_custom_call.1} parent=1 // loop_footer
      %s19 = sadd.s32 1, %s15
    $region7: #{tpu_custom_call.1} parent=1 // loop_footer_branch
      %14 = sbr.rel target = $region3
    $region8: #{tpu_custom_call.1} parent=1 // loop_exit
      _
    %237 = vsyncpa [#allocation4], 1
    %s238 = scalar_lea.sflag [#allocation4], 1
    %239 = vsyncpa %s238, 1
    %240 = vsyncpa [#allocation5], 1
    %s241 = scalar_lea.sflag [#allocation5], 1
    %242 = vsyncpa %s241, 1

</llo_original>
